<compile_context>
chip_gen: v7x
topology: tpu7x:2x2x1
jax: 0.10.0
libtpu: 0.0.40
codegen_flags: <defaults>
</compile_context>

<pallas_src>
import jax
import jax.numpy as jnp
from jax.experimental import pallas as pl
from jax.experimental.pallas import tpu as pltpu

NEG_SLOPE = 0.01  # F.leaky_relu default


def _leaky_relu(x):
    return jnp.where(x >= 0, x, NEG_SLOPE * x)


def _round_up(n, m):
    return ((n + m - 1) // m) * m


# ----------------------------------------------------------------------------- kernel
def mlp_kernel(x_ref, w0_ref, w1_ref, w2_ref, o_ref):
    # Biases are folded into the weight matrices (ones column in the padded input /
    # hidden activations), so each layer is a plain matmul + leaky_relu.
    h = jnp.dot(x_ref[...], w0_ref[...], preferred_element_type=jnp.float32)
    h = _leaky_relu(h)
    h = jnp.dot(h.astype(w1_ref.dtype), w1_ref[...], preferred_element_type=jnp.float32)
    h = _leaky_relu(h)
    h = jnp.dot(h.astype(w2_ref.dtype), w2_ref[...], preferred_element_type=jnp.float32)
    h = _leaky_relu(h)  # MLP.forward applies leaky_relu to the output layer as well
    o_ref[...] = h.astype(o_ref.dtype)


# ----------------------------------------------------------------------------- wrapper
def mlp_forward(obs, packed, *, tm=512):
    """obs: (B, n_input) float32. packed: dict from pack_params()."""
    B, n_in = obs.shape
    assert n_in == packed["n_in"]
    n_in_pad = packed["n_in_pad"]
    O, O_pad = packed["n_out"], packed["n_out_pad"]
    W0, W1, W2 = packed["W0"], packed["W1"], packed["W2"]

    # Batch tile: multiple of 8 sublanes, capped at `tm` rows per grid step.
    TM = min(tm, _round_up(B, 8))
    num_tiles = pl.cdiv(B, TM)
    B_pad = num_tiles * TM

    # Lane-dense, zero-padded input with a "ones" column feeding the folded biases.
    x = jnp.zeros((B_pad, n_in_pad), jnp.float32)
    x = x.at[:B, :n_in].set(obs)
    x = x.at[:, n_in].set(1.0)
    x = x.astype(W0.dtype)

    out = pl.pallas_call(
        mlp_kernel,
        out_shape=jax.ShapeDtypeStruct((B_pad, O_pad), jnp.float32),
        grid=(num_tiles,),
        in_specs=[
            pl.BlockSpec((TM, n_in_pad), lambda i: (i, 0)),   # activations: tiled over batch
            pl.BlockSpec(W0.shape, lambda i: (0, 0)),          # weights: VMEM-resident
            pl.BlockSpec(W1.shape, lambda i: (0, 0)),
            pl.BlockSpec(W2.shape, lambda i: (0, 0)),
        ],
        out_specs=pl.BlockSpec((TM, O_pad), lambda i: (i, 0)),
        compiler_params=pltpu.CompilerParams(
            dimension_semantics=("parallel",)),  # batch tiles independent (megacore)
    )(x, W0, W1, W2)

    return out[:B, :O]


# ----------------------------------------------------------------------------- params
def init_raw_params(key, n_input, n_output, hidden_dim):
    """PyTorch-layout params for MLP(num_layers=2): three Linear layers."""
    k = jax.random.split(key, 6)
    w0 = jax.random.normal(k[0], (hidden_dim, n_input), jnp.float32) * 0.1
    b0 = jax.random.normal(k[1], (hidden_dim,), jnp.float32) * 0.1
    w1 = jax.random.normal(k[2], (hidden_dim, hidden_dim), jnp.float32) * 0.1
    b1 = jax.random.normal(k[3], (hidden_dim,), jnp.float32) * 0.1
    w2 = jax.random.normal(k[4], (n_output, hidden_dim), jnp.float32) * 0.1
    b2 = jax.random.normal(k[5], (n_output,), jnp.float32) * 0.1
    return (w0, b0, w1, b1, w2, b2)


def pack_params(raw, dtype=jnp.bfloat16):
    """Pad all feature dims to multiples of 128 and fold biases into the weights.

    Layout (input-major matmul weights):
      W0: (n_in_pad, H_pad)   row n_in holds b0; W0[n_in, H] = 1 keeps a ones column alive
      W1: (H_pad,   H_pad)    row H    holds b1; W1[H, H]    = 1 keeps the ones column alive
      W2: (H_pad,   O_pad)    row H    holds b2
    The wrapper sets x[:, n_in] = 1, so x @ W0 == x_real @ w0.T + b0 (and so on).
    """
    w0, b0, w1, b1, w2, b2 = raw
    H, n_in = w0.shape
    O = w2.shape[0]
    n_in_pad = _round_up(n_in + 1, 128)   # +1 spare column for the folded bias / ones
    H_pad = _round_up(H + 1, 128)
    O_pad = _round_up(O, 128)

    W0 = jnp.zeros((n_in_pad, H_pad), jnp.float32)
    W0 = W0.at[:n_in, :H].set(w0.T)
    W0 = W0.at[n_in, :H].set(b0)
    W0 = W0.at[n_in, H].set(1.0)

    W1 = jnp.zeros((H_pad, H_pad), jnp.float32)
    W1 = W1.at[:H, :H].set(w1.T)
    W1 = W1.at[H, :H].set(b1)
    W1 = W1.at[H, H].set(1.0)

    W2 = jnp.zeros((H_pad, O_pad), jnp.float32)
    W2 = W2.at[:H, :O].set(w2.T)
    W2 = W2.at[H, :O].set(b2)

    return {
        "W0": W0.astype(dtype), "W1": W1.astype(dtype), "W2": W2.astype(dtype),
        "n_in": n_in, "n_in_pad": n_in_pad,
        "hidden_pad": H_pad, "n_out": O, "n_out_pad": O_pad,
    }


# ----------------------------------------------------------------------------- reference
def reference_forward(obs, raw):
    """Pure-JAX f32 reference reproducing the PyTorch MLP.forward exactly."""
    w0, b0, w1, b1, w2, b2 = raw
    h = _leaky_relu(obs @ w0.T + b0)
    h = _leaky_relu(h @ w1.T + b1)
    h = _leaky_relu(h @ w2.T + b2)
    return h


if __name__ == "__main__":
    B = 2
    n_input = 64
    hidden_dim = 32
    n_output = 8

    key = jax.random.PRNGKey(0)
    k_obs, k_par = jax.random.split(key)
    obs = jax.random.normal(k_obs, (B, n_input), jnp.float32)

    raw = init_raw_params(k_par, n_input, n_output, hidden_dim)
    packed = pack_params(raw)   # bf16 operands, f32 accumulation in the kernel

    out = mlp_forward(obs, packed)
    out = jax.block_until_ready(out)

    ref = reference_forward(obs, raw)
    assert out.shape == (B, n_output)
    max_err = jnp.max(jnp.abs(out - ref))
    # bf16 matmul operands -> tolerance loosened vs. pure-f32.
    assert jnp.allclose(out, ref, atol=4e-2, rtol=4e-2), f"max err {max_err}"
    print("KERNEL_OK")
</pallas_src>

<mosaic_0001>
module attributes {stable_mosaic.version = 11 : i64} {
  func.func @mlp_kernel(%arg0: i32, %arg1: memref<8x128xbf16, #tpu.memory_space<vmem>>, %arg2: memref<128x128xbf16, #tpu.memory_space<vmem>>, %arg3: memref<128x128xbf16, #tpu.memory_space<vmem>>, %arg4: memref<128x128xbf16, #tpu.memory_space<vmem>>, %arg5: memref<8x128xf32, #tpu.memory_space<vmem>>) attributes {dimension_semantics = [#tpu.dimension_semantics<parallel>], iteration_bounds = array<i64: 1>, scalar_prefetch = 0 : i64, scratch_operands = 0 : i64, tpu.core_type = #tpu.core_type<tc>, window_params = [{transform_indices = @transform_0, window_bounds = array<i64: 8, 128>}, {pipeline_mode = #tpu.pipeline_mode<synchronous>, transform_indices = @transform_1, window_bounds = array<i64: 128, 128>}, {pipeline_mode = #tpu.pipeline_mode<synchronous>, transform_indices = @transform_2, window_bounds = array<i64: 128, 128>}, {pipeline_mode = #tpu.pipeline_mode<synchronous>, transform_indices = @transform_3, window_bounds = array<i64: 128, 128>}, {transform_indices = @transform_4, window_bounds = array<i64: 8, 128>}]} {
    %c0 = arith.constant 0 : index
    %c0_0 = arith.constant 0 : index
    %0 = vector.load %arg1[%c0, %c0_0] : memref<8x128xbf16, #tpu.memory_space<vmem>>, vector<8x128xbf16>
    %c0_1 = arith.constant 0 : index
    %c0_2 = arith.constant 0 : index
    %1 = vector.load %arg2[%c0_1, %c0_2] : memref<128x128xbf16, #tpu.memory_space<vmem>>, vector<128x128xbf16>
    %cst = arith.constant dense<0.000000e+00> : vector<8x128xf32>
    %2 = tpu.matmul %0, %1, %cst {dimension_numbers = #tpu.dot_dimension_numbers<[1], [0], [0], [1], [0, 0, 1, 1], [], []>} : vector<8x128xbf16>, vector<128x128xbf16>, vector<8x128xf32> -> vector<8x128xf32>
    %cst_3 = arith.constant 0.000000e+00 : f32
    %3 = vector.broadcast %cst_3 : f32 to vector<8x128xf32>
    %4 = arith.cmpf oge, %2, %3 : vector<8x128xf32>
    %cst_4 = arith.constant 0.00999999977 : f32
    %5 = vector.broadcast %cst_4 : f32 to vector<8x128xf32>
    %6 = arith.mulf %5, %2 : vector<8x128xf32>
    %7 = arith.select %4, %2, %6 : vector<8x128xi1>, vector<8x128xf32>
    %8 = arith.truncf %7 : vector<8x128xf32> to vector<8x128xbf16>
    %c0_5 = arith.constant 0 : index
    %c0_6 = arith.constant 0 : index
    %9 = vector.load %arg3[%c0_5, %c0_6] : memref<128x128xbf16, #tpu.memory_space<vmem>>, vector<128x128xbf16>
    %cst_7 = arith.constant dense<0.000000e+00> : vector<8x128xf32>
    %10 = tpu.matmul %8, %9, %cst_7 {dimension_numbers = #tpu.dot_dimension_numbers<[1], [0], [0], [1], [0, 0, 1, 1], [], []>} : vector<8x128xbf16>, vector<128x128xbf16>, vector<8x128xf32> -> vector<8x128xf32>
    %cst_8 = arith.constant 0.000000e+00 : f32
    %11 = vector.broadcast %cst_8 : f32 to vector<8x128xf32>
    %12 = arith.cmpf oge, %10, %11 : vector<8x128xf32>
    %cst_9 = arith.constant 0.00999999977 : f32
    %13 = vector.broadcast %cst_9 : f32 to vector<8x128xf32>
    %14 = arith.mulf %13, %10 : vector<8x128xf32>
    %15 = arith.select %12, %10, %14 : vector<8x128xi1>, vector<8x128xf32>
    %16 = arith.truncf %15 : vector<8x128xf32> to vector<8x128xbf16>
    %c0_10 = arith.constant 0 : index
    %c0_11 = arith.constant 0 : index
    %17 = vector.load %arg4[%c0_10, %c0_11] : memref<128x128xbf16, #tpu.memory_space<vmem>>, vector<128x128xbf16>
    %cst_12 = arith.constant dense<0.000000e+00> : vector<8x128xf32>
    %18 = tpu.matmul %16, %17, %cst_12 {dimension_numbers = #tpu.dot_dimension_numbers<[1], [0], [0], [1], [0, 0, 1, 1], [], []>} : vector<8x128xbf16>, vector<128x128xbf16>, vector<8x128xf32> -> vector<8x128xf32>
    %cst_13 = arith.constant 0.000000e+00 : f32
    %19 = vector.broadcast %cst_13 : f32 to vector<8x128xf32>
    %20 = arith.cmpf oge, %18, %19 : vector<8x128xf32>
    %cst_14 = arith.constant 0.00999999977 : f32
    %21 = vector.broadcast %cst_14 : f32 to vector<8x128xf32>
    %22 = arith.mulf %21, %18 : vector<8x128xf32>
    %23 = arith.select %20, %18, %22 : vector<8x128xi1>, vector<8x128xf32>
    %c0_15 = arith.constant 0 : index
    %c0_16 = arith.constant 0 : index
    %24 = vector.load %arg5[%c0_15, %c0_16] : memref<8x128xf32, #tpu.memory_space<vmem>>, vector<8x128xf32>
    tpu.vector_store %arg5[%c0_15, %c0_16], %23 {strides = array<i32>} : memref<8x128xf32, #tpu.memory_space<vmem>>, vector<8x128xf32>,
    return
  }
  func.func @transform_0(%arg0: i32) -> (i32, i32) {
    %c0_i32 = arith.constant 0 : i32
    %c0_i32_0 = arith.constant 0 : i32
    return %arg0, %c0_i32 : i32, i32
  }
  func.func @transform_1(%arg0: i32) -> (i32, i32) {
    %c0_i32 = arith.constant 0 : i32
    %c0_i32_0 = arith.constant 0 : i32
    %c0_i32_1 = arith.constant 0 : i32
    return %c0_i32, %c0_i32_0 : i32, i32
  }
  func.func @transform_2(%arg0: i32) -> (i32, i32) {
    %c0_i32 = arith.constant 0 : i32
    %c0_i32_0 = arith.constant 0 : i32
    %c0_i32_1 = arith.constant 0 : i32
    return %c0_i32, %c0_i32_0 : i32, i32
  }
  func.func @transform_3(%arg0: i32) -> (i32, i32) {
    %c0_i32 = arith.constant 0 : i32
    %c0_i32_0 = arith.constant 0 : i32
    %c0_i32_1 = arith.constant 0 : i32
    return %c0_i32, %c0_i32_0 : i32, i32
  }
  func.func @transform_4(%arg0: i32) -> (i32, i32) {
    %c0_i32 = arith.constant 0 : i32
    %c0_i32_0 = arith.constant 0 : i32
    return %arg0, %c0_i32 : i32, i32
  }
}

</mosaic_0001>

<llo_original>
// kernel: tpu_custom_call.1
$region0: #{tpu_custom_call.1}
  #allocation0 [shape = 'u32[]', space=smem, size = 0x4, offset = 0x4, fixed_abs, tag = 'smem constant byte address 0x4 - core index']
  #allocation1 [shape = 'u32[144,128]{1,0:T(1,128)}', space=vmem, size = 0x12000, scoped, tag = 'internal scratch']
  %s0 = inlined_call_operand.hbm [shape: bf16[8,128], index: 0, kind: input, shape index: {}]
  %s1 = inlined_call_operand.hbm [shape: bf16[128,128], index: 1, kind: input, shape index: {}]
  %s2 = inlined_call_operand.hbm [shape: bf16[128,128], index: 2, kind: input, shape index: {}]
  %s3 = inlined_call_operand.hbm [shape: bf16[128,128], index: 3, kind: input, shape index: {}]
  %s4 = inlined_call_operand.hbm [shape: f32[8,128], index: 4, kind: output, shape index: {}]
  %s5 = sld [smem:[#allocation0]]
  $region42: #{tpu_custom_call.1} parent=0
    _
  %s7 = ssub.s32 1, %s5
  %s8 = scalar_select 0, %s7, %s5
  $region1: #{tpu_custom_call.1} parent=0
    #allocation2 [shape = 'u8[2048]{0}', space=vmem, size = 0x800, scoped, tag = 'input window, operand 0, single buffered']
    #allocation3 [shape = 's32[1]{0}', space=sflag, size = 0x4, scoped, tag = 'scoped memory for tpu_custom_call.1']
    #allocation4 [shape = 's32[1]{0}', space=sflag, size = 0x4, scoped, tag = 'scoped memory for tpu_custom_call.1']
    #allocation5 [shape = 'u8[32768]{0}', space=vmem, size = 0x8000, scoped, tag = 'input window, operand 1, single buffered']
    #allocation6 [shape = 's32[1]{0}', space=sflag, size = 0x4, scoped, tag = 'scoped memory for tpu_custom_call.1']
    #allocation7 [shape = 'u8[32768]{0}', space=vmem, size = 0x8000, scoped, tag = 'input window, operand 2, single buffered']
    #allocation8 [shape = 'u8[32768]{0}', space=vmem, size = 0x8000, scoped, tag = 'input window, operand 3, single buffered']
    #allocation9 [shape = 's32[1]{0}', space=sflag, size = 0x4, scoped, tag = 'scoped memory for tpu_custom_call.1']
    #allocation10 [shape = 'u8[4096]{0}', space=vmem, size = 0x1000, scoped, tag = 'output window, operand 0, single buffered']
    %9 = vsyncpa [#allocation3], 0
    %10 = vsyncpa [#allocation6], 0
    %11 = vsyncpa [#allocation9], 0
    %12 = vsyncpa [#allocation4], 0
    // Predicated region
    $region2: #{tpu_custom_call.1} parent=1 // pred_check
      _
    $region3: #{tpu_custom_call.1} parent=1 // pred_check_branch
      %14 = sbr.rel (0) target = $region5
    $region4: #{tpu_custom_call.1} parent=1 // pred_region
      %s16 = ssub.s32 64, 64
      %17 = vsyncadd [#allocation3], %s16
      %s19 = sshll.u32 [#allocation2], 4
      %s20 = int_to_ptr.vmem [resolvable:$true] %s19
      %22 = dma.hbm_to_vmem [thread:$0]  %s0, 64, %s20, [#allocation3]
    $region5: #{tpu_custom_call.1} parent=1 // pred_fallthru
      _
    // Predicated region
    $region6: #{tpu_custom_call.1} parent=1 // pred_check
      _
    $region7: #{tpu_custom_call.1} parent=1 // pred_check_branch
      %24 = sbr.rel (0) target = $region9
    $region8: #{tpu_custom_call.1} parent=1 // pred_region
      %s26 = ssub.s32 1024, 1024
      %27 = vsyncadd [#allocation6], %s26
      %s28 = sshll.u32 [#allocation5], 4
      %s29 = int_to_ptr.vmem [resolvable:$true] %s28
      %34 = dma.hbm_to_vmem [thread:$0]  %s1, 1024, %s29, [#allocation6], 64, 64, 4
    $region9: #{tpu_custom_call.1} parent=1 // pred_fallthru
      _
    // Predicated region
    $region10: #{tpu_custom_call.1} parent=1 // pred_check
      _
    $region11: #{tpu_custom_call.1} parent=1 // pred_check_branch
      %36 = sbr.rel (0) target = $region13
    $region12: #{tpu_custom_call.1} parent=1 // pred_region
      %s38 = ssub.s32 1024, 1024
      %39 = vsyncadd [#allocation6], %s38
      %s40 = sshll.u32 [#allocation7], 4
      %s41 = int_to_ptr.vmem [resolvable:$true] %s40
      %46 = dma.hbm_to_vmem [thread:$0]  %s2, 1024, %s41, [#allocation6], 64, 64, 4
    $region13: #{tpu_custom_call.1} parent=1 // pred_fallthru
      _
    // Predicated region
    $region14: #{tpu_custom_call.1} parent=1 // pred_check
      _
    $region15: #{tpu_custom_call.1} parent=1 // pred_check_branch
      %48 = sbr.rel (0) target = $region17
    $region16: #{tpu_custom_call.1} parent=1 // pred_region
      %s50 = ssub.s32 1024, 1024
      %51 = vsyncadd [#allocation9], %s50
      %s52 = sshll.u32 [#allocation8], 4
      %s53 = int_to_ptr.vmem [resolvable:$true] %s52
      %58 = dma.hbm_to_vmem [thread:$0]  %s3, 1024, %s53, [#allocation9], 64, 64, 4
    $region17: #{tpu_custom_call.1} parent=1 // pred_fallthru
      _
    // Predicated region
    $region18: #{tpu_custom_call.1} parent=1 // pred_check
      _
    $region19: #{tpu_custom_call.1} parent=1 // pred_check_branch
      %60 = sbr.rel (0) target = $region21
    $region20: #{tpu_custom_call.1} parent=1 // pred_region
      %61 = dma.done [#allocation3], 64
    $region21: #{tpu_custom_call.1} parent=1 // pred_fallthru
      _
    // Predicated region
    $region22: #{tpu_custom_call.1} parent=1 // pred_check
      _
    $region23: #{tpu_custom_call.1} parent=1 // pred_check_branch
      %63 = sbr.rel (0) target = $region25
    $region24: #{tpu_custom_call.1} parent=1 // pred_region
      %64 = dma.done [#allocation6], 1024
    $region25: #{tpu_custom_call.1} parent=1 // pred_fallthru
      _
    // Predicated region
    $region26: #{tpu_custom_call.1} parent=1 // pred_check
      _
    $region27: #{tpu_custom_call.1} parent=1 // pred_check_branch
      %66 = sbr.rel (0) target = $region29
    $region28: #{tpu_custom_call.1} parent=1 // pred_region
      %67 = dma.done [#allocation6], 1024
    $region29: #{tpu_custom_call.1} parent=1 // pred_fallthru
      _
    // Predicated region
    $region30: #{tpu_custom_call.1} parent=1 // pred_check
      _
    $region31: #{tpu_custom_call.1} parent=1 // pred_check_branch
      %69 = sbr.rel (0) target = $region33
    $region32: #{tpu_custom_call.1} parent=1 // pred_region
      %70 = dma.done [#allocation9], 1024
    $region33: #{tpu_custom_call.1} parent=1 // pred_fallthru
      _
    %v72 = vld [vmem:[#allocation2] sm:$0xf]
    %v73 = vld [vmem:[#allocation5] sm:$0xf]
    %v74 = vld [vmem:[#allocation5 + $0x4] sm:$0xf]
    %v75 = vld [vmem:[#allocation5 + $0x8] sm:$0xf]
    %v76 = vld [vmem:[#allocation5 + $0xc] sm:$0xf]
    %v77 = vld [vmem:[#allocation5 + $0x10] sm:$0xf]
    %v78 = vld [vmem:[#allocation5 + $0x14] sm:$0xf]
    %v79 = vld [vmem:[#allocation5 + $0x18] sm:$0xf]
    %v80 = vld [vmem:[#allocation5 + $0x1c] sm:$0xf]
    %v81 = vld [vmem:[#allocation5 + $0x20] sm:$0xf]
    %v82 = vld [vmem:[#allocation5 + $0x24] sm:$0xf]
    %v83 = vld [vmem:[#allocation5 + $0x28] sm:$0xf]
    %v84 = vld [vmem:[#allocation5 + $0x2c] sm:$0xf]
    %v85 = vld [vmem:[#allocation5 + $0x30] sm:$0xf]
    %v86 = vld [vmem:[#allocation5 + $0x34] sm:$0xf]
    %v87 = vld [vmem:[#allocation5 + $0x38] sm:$0xf]
    %v88 = vld [vmem:[#allocation5 + $0x3c] sm:$0xf]
    %v105 = vunpack.c.l.b16 %v73
    %v106 = vunpack.c.l.b16 %v74
    %v107 = vunpack.c.l.b16 %v75
    %v108 = vunpack.c.l.b16 %v76
    %v109 = vunpack.c.l.b16 %v77
    %v110 = vunpack.c.l.b16 %v78
    %v111 = vunpack.c.l.b16 %v79
    %v112 = vunpack.c.l.b16 %v80
    %v113 = vunpack.c.l.b16 %v81
    %v114 = vunpack.c.l.b16 %v82
    %v115 = vunpack.c.l.b16 %v83
    %v116 = vunpack.c.l.b16 %v84
    %v117 = vunpack.c.l.b16 %v85
    %v118 = vunpack.c.l.b16 %v86
    %v119 = vunpack.c.l.b16 %v87
    %v120 = vunpack.c.l.b16 %v88
    %v121 = vpack.c.b16 %v106, %v105
    %v122 = vpack.c.b16 %v108, %v107
    %v123 = vpack.c.b16 %v110, %v109
    %v124 = vpack.c.b16 %v112, %v111
    %v125 = vpack.c.b16 %v114, %v113
    %v126 = vpack.c.b16 %v116, %v115
    %v127 = vpack.c.b16 %v118, %v117
    %v128 = vpack.c.b16 %v120, %v119
    %137 = vmatprep.subr.bf16.mxu0 0
    %138 = vmatpush1.bf16.msra.mxu0 %v121
    %139 = vmatprep.subr.bf16.mxu0 0
    %140 = vmatpush1.bf16.msra.mxu0 %v122
    %141 = vmatprep.subr.bf16.mxu0 0
    %142 = vmatpush1.bf16.msra.mxu0 %v123
    %143 = vmatprep.subr.bf16.mxu0 0
    %144 = vmatpush1.bf16.msra.mxu0 %v124
    %145 = vmatprep.subr.bf16.mxu0 0
    %146 = vmatpush1.bf16.msra.mxu0 %v125
    %147 = vmatprep.subr.bf16.mxu0 0
    %148 = vmatpush1.bf16.msra.mxu0 %v126
    %149 = vmatprep.subr.bf16.mxu0 0
    %150 = vmatpush1.bf16.msra.mxu0 %v127
    %151 = vmatprep.subr.bf16.mxu0 0
    %152 = vmatpush1.bf16.msra.mxu0 %v128
    %153 = vmatprep.subr.bf16.mxu0 0
    %154 = vmatpush1.bf16.msra.mxu0 0
    %155 = vmatprep.subr.bf16.mxu0 0
    %156 = vmatpush1.bf16.msra.mxu0 0
    %157 = vmatprep.subr.bf16.mxu0 0
    %158 = vmatpush1.bf16.msra.mxu0 0
    %159 = vmatprep.subr.bf16.mxu0 0
    %160 = vmatpush1.bf16.msra.mxu0 0
    %161 = vmatprep.subr.bf16.mxu0 0
    %162 = vmatpush1.bf16.msra.mxu0 0
    %163 = vmatprep.subr.bf16.mxu0 0
    %164 = vmatpush1.bf16.msra.mxu0 0
    %165 = vmatprep.subr.bf16.mxu0 0
    %166 = vmatpush1.bf16.msra.mxu0 0
    %167 = vmatprep.subr.bf16.mxu0 0
    %168 = vmatpush1.bf16.msra.mxu0 0
    %169 = vmatprep.mubr.bf16.mxu0 0
    %170 = vmatmul.mubr.bf16.gmra.mrb[0].mxu0 %v72
    %v171 = vpop.f32.mrb[0].mxu0
    %v172 = vadd.f32 0.0, %v171
    %v173 = vpop.f32.mrb[0].mxu0
    %v174 = vpop.f32.mrb[0].mxu0
    %v175 = vpop.f32.mrb[0].mxu0
    %176 = vdwg.mxu0
    %vm177 = vcmp.ge.f32.partialorder %v172, 0.0
    %v178 = vmul.f32 %v172, 0.01
    %v179 = vsel %vm177, %v172, %v178
    %v180 = vpack.c.bf16 %v179, %v179
    %v181 = vld [vmem:[#allocation7] sm:$0xf]
    %v182 = vld [vmem:[#allocation7 + $0x4] sm:$0xf]
    %v183 = vld [vmem:[#allocation7 + $0x8] sm:$0xf]
    %v184 = vld [vmem:[#allocation7 + $0xc] sm:$0xf]
    %v185 = vld [vmem:[#allocation7 + $0x10] sm:$0xf]
    %v186 = vld [vmem:[#allocation7 + $0x14] sm:$0xf]
    %v187 = vld [vmem:[#allocation7 + $0x18] sm:$0xf]
    %v188 = vld [vmem:[#allocation7 + $0x1c] sm:$0xf]
    %v189 = vld [vmem:[#allocation7 + $0x20] sm:$0xf]
    %v190 = vld [vmem:[#allocation7 + $0x24] sm:$0xf]
    %v191 = vld [vmem:[#allocation7 + $0x28] sm:$0xf]
    %v192 = vld [vmem:[#allocation7 + $0x2c] sm:$0xf]
    %v193 = vld [vmem:[#allocation7 + $0x30] sm:$0xf]
    %v194 = vld [vmem:[#allocation7 + $0x34] sm:$0xf]
    %v195 = vld [vmem:[#allocation7 + $0x38] sm:$0xf]
    %v196 = vld [vmem:[#allocation7 + $0x3c] sm:$0xf]
    %v213 = vunpack.c.l.b16 %v181
    %v214 = vunpack.c.l.b16 %v182
    %v215 = vunpack.c.l.b16 %v183
    %v216 = vunpack.c.l.b16 %v184
    %v217 = vunpack.c.l.b16 %v185
    %v218 = vunpack.c.l.b16 %v186
    %v219 = vunpack.c.l.b16 %v187
    %v220 = vunpack.c.l.b16 %v188
    %v221 = vunpack.c.l.b16 %v189
    %v222 = vunpack.c.l.b16 %v190
    %v223 = vunpack.c.l.b16 %v191
    %v224 = vunpack.c.l.b16 %v192
    %v225 = vunpack.c.l.b16 %v193
    %v226 = vunpack.c.l.b16 %v194
    %v227 = vunpack.c.l.b16 %v195
    %v228 = vunpack.c.l.b16 %v196
    %v229 = vpack.c.b16 %v214, %v213
    %v230 = vpack.c.b16 %v216, %v215
    %v231 = vpack.c.b16 %v218, %v217
    %v232 = vpack.c.b16 %v220, %v219
    %v233 = vpack.c.b16 %v222, %v221
    %v234 = vpack.c.b16 %v224, %v223
    %v235 = vpack.c.b16 %v226, %v225
    %v236 = vpack.c.b16 %v228, %v227
    %245 = vmatprep.subr.bf16.mxu0 0
    %246 = vmatpush1.bf16.msra.mxu0 %v229
    %247 = vmatprep.subr.bf16.mxu0 0
    %248 = vmatpush1.bf16.msra.mxu0 %v230
    %249 = vmatprep.subr.bf16.mxu0 0
    %250 = vmatpush1.bf16.msra.mxu0 %v231
    %251 = vmatprep.subr.bf16.mxu0 0
    %252 = vmatpush1.bf16.msra.mxu0 %v232
    %253 = vmatprep.subr.bf16.mxu0 0
    %254 = vmatpush1.bf16.msra.mxu0 %v233
    %255 = vmatprep.subr.bf16.mxu0 0
    %256 = vmatpush1.bf16.msra.mxu0 %v234
    %257 = vmatprep.subr.bf16.mxu0 0
    %258 = vmatpush1.bf16.msra.mxu0 %v235
    %259 = vmatprep.subr.bf16.mxu0 0
    %260 = vmatpush1.bf16.msra.mxu0 %v236
    %261 = vmatprep.subr.bf16.mxu0 0
    %262 = vmatpush1.bf16.msra.mxu0 0
    %263 = vmatprep.subr.bf16.mxu0 0
    %264 = vmatpush1.bf16.msra.mxu0 0
    %265 = vmatprep.subr.bf16.mxu0 0
    %266 = vmatpush1.bf16.msra.mxu0 0
    %267 = vmatprep.subr.bf16.mxu0 0
    %268 = vmatpush1.bf16.msra.mxu0 0
    %269 = vmatprep.subr.bf16.mxu0 0
    %270 = vmatpush1.bf16.msra.mxu0 0
    %271 = vmatprep.subr.bf16.mxu0 0
    %272 = vmatpush1.bf16.msra.mxu0 0
    %273 = vmatprep.subr.bf16.mxu0 0
    %274 = vmatpush1.bf16.msra.mxu0 0
    %275 = vmatprep.subr.bf16.mxu0 0
    %276 = vmatpush1.bf16.msra.mxu0 0
    %277 = vmatprep.mubr.bf16.mxu0 0
    %278 = vmatmul.mubr.bf16.gmra.mrb[0].mxu0 %v180
    %v279 = vpop.f32.mrb[0].mxu0
    %v280 = vadd.f32 0.0, %v279
    %v281 = vpop.f32.mrb[0].mxu0
    %v282 = vpop.f32.mrb[0].mxu0
    %v283 = vpop.f32.mrb[0].mxu0
    %284 = vdwg.mxu0
    %vm285 = vcmp.ge.f32.partialorder %v280, 0.0
    %v286 = vmul.f32 %v280, 0.01
    %v287 = vsel %vm285, %v280, %v286
    %v288 = vpack.c.bf16 %v287, %v287
    %v289 = vld [vmem:[#allocation8] sm:$0xf]
    %v290 = vld [vmem:[#allocation8 + $0x4] sm:$0xf]
    %v291 = vld [vmem:[#allocation8 + $0x8] sm:$0xf]
    %v292 = vld [vmem:[#allocation8 + $0xc] sm:$0xf]
    %v293 = vld [vmem:[#allocation8 + $0x10] sm:$0xf]
    %v294 = vld [vmem:[#allocation8 + $0x14] sm:$0xf]
    %v295 = vld [vmem:[#allocation8 + $0x18] sm:$0xf]
    %v296 = vld [vmem:[#allocation8 + $0x1c] sm:$0xf]
    %v297 = vld [vmem:[#allocation8 + $0x20] sm:$0xf]
    %v298 = vld [vmem:[#allocation8 + $0x24] sm:$0xf]
    %v299 = vld [vmem:[#allocation8 + $0x28] sm:$0xf]
    %v300 = vld [vmem:[#allocation8 + $0x2c] sm:$0xf]
    %v301 = vld [vmem:[#allocation8 + $0x30] sm:$0xf]
    %v302 = vld [vmem:[#allocation8 + $0x34] sm:$0xf]
    %v303 = vld [vmem:[#allocation8 + $0x38] sm:$0xf]
    %v304 = vld [vmem:[#allocation8 + $0x3c] sm:$0xf]
    %v321 = vunpack.c.l.b16 %v289
    %v322 = vunpack.c.l.b16 %v290
    %v323 = vunpack.c.l.b16 %v291
    %v324 = vunpack.c.l.b16 %v292
    %v325 = vunpack.c.l.b16 %v293
    %v326 = vunpack.c.l.b16 %v294
    %v327 = vunpack.c.l.b16 %v295
    %v328 = vunpack.c.l.b16 %v296
    %v329 = vunpack.c.l.b16 %v297
    %v330 = vunpack.c.l.b16 %v298
    %v331 = vunpack.c.l.b16 %v299
    %v332 = vunpack.c.l.b16 %v300
    %v333 = vunpack.c.l.b16 %v301
    %v334 = vunpack.c.l.b16 %v302
    %v335 = vunpack.c.l.b16 %v303
    %v336 = vunpack.c.l.b16 %v304
    %v337 = vpack.c.b16 %v322, %v321
    %v338 = vpack.c.b16 %v324, %v323
    %v339 = vpack.c.b16 %v326, %v325
    %v340 = vpack.c.b16 %v328, %v327
    %v341 = vpack.c.b16 %v330, %v329
    %v342 = vpack.c.b16 %v332, %v331
    %v343 = vpack.c.b16 %v334, %v333
    %v344 = vpack.c.b16 %v336, %v335
    %353 = vmatprep.subr.bf16.mxu0 0
    %354 = vmatpush1.bf16.msra.mxu0 %v337
    %355 = vmatprep.subr.bf16.mxu0 0
    %356 = vmatpush1.bf16.msra.mxu0 %v338
    %357 = vmatprep.subr.bf16.mxu0 0
    %358 = vmatpush1.bf16.msra.mxu0 %v339
    %359 = vmatprep.subr.bf16.mxu0 0
    %360 = vmatpush1.bf16.msra.mxu0 %v340
    %361 = vmatprep.subr.bf16.mxu0 0
    %362 = vmatpush1.bf16.msra.mxu0 %v341
    %363 = vmatprep.subr.bf16.mxu0 0
    %364 = vmatpush1.bf16.msra.mxu0 %v342
    %365 = vmatprep.subr.bf16.mxu0 0
    %366 = vmatpush1.bf16.msra.mxu0 %v343
    %367 = vmatprep.subr.bf16.mxu0 0
    %368 = vmatpush1.bf16.msra.mxu0 %v344
    %369 = vmatprep.subr.bf16.mxu0 0
    %370 = vmatpush1.bf16.msra.mxu0 0
    %371 = vmatprep.subr.bf16.mxu0 0
    %372 = vmatpush1.bf16.msra.mxu0 0
    %373 = vmatprep.subr.bf16.mxu0 0
    %374 = vmatpush1.bf16.msra.mxu0 0
    %375 = vmatprep.subr.bf16.mxu0 0
    %376 = vmatpush1.bf16.msra.mxu0 0
    %377 = vmatprep.subr.bf16.mxu0 0
    %378 = vmatpush1.bf16.msra.mxu0 0
    %379 = vmatprep.subr.bf16.mxu0 0
    %380 = vmatpush1.bf16.msra.mxu0 0
    %381 = vmatprep.subr.bf16.mxu0 0
    %382 = vmatpush1.bf16.msra.mxu0 0
    %383 = vmatprep.subr.bf16.mxu0 0
    %384 = vmatpush1.bf16.msra.mxu0 0
    %385 = vmatprep.mubr.bf16.mxu0 0
    %386 = vmatmul.mubr.bf16.gmra.mrb[0].mxu0 %v288
    %v387 = vpop.f32.mrb[0].mxu0
    %v388 = vadd.f32 0.0, %v387
    %v389 = vpop.f32.mrb[0].mxu0
    %v390 = vpop.f32.mrb[0].mxu0
    %v391 = vpop.f32.mrb[0].mxu0
    %392 = vdwg.mxu0
    %vm393 = vcmp.ge.f32.partialorder %v388, 0.0
    %v394 = vmul.f32 %v388, 0.01
    %v395 = vsel %vm393, %v388, %v394
    %396 = vst [vmem:[#allocation10] sm:$0xff] %v395
    // Predicated region
    $region34: #{tpu_custom_call.1} parent=1 // pred_check
      _
    $region35: #{tpu_custom_call.1} parent=1 // pred_check_branch
      %398 = sbr.rel (0) target = $region37
    $region36: #{tpu_custom_call.1} parent=1 // pred_region
      %s400 = ssub.s32 128, 128
      %401 = vsyncadd [#allocation4], %s400
      %s403 = sshll.u32 [#allocation10], 4
      %s404 = int_to_ptr.vmem [resolvable:$true] %s403
      %406 = dma.vmem_to_hbm [thread:$0]  %s404, 128, %s4, [#allocation4]
    $region37: #{tpu_custom_call.1} parent=1 // pred_fallthru
      _
    // Predicated region
    $region38: #{tpu_custom_call.1} parent=1 // pred_check
      _
    $region39: #{tpu_custom_call.1} parent=1 // pred_check_branch
      %408 = sbr.rel (0) target = $region41
    $region40: #{tpu_custom_call.1} parent=1 // pred_region
      %409 = dma.done [#allocation4], 128
    $region41: #{tpu_custom_call.1} parent=1 // pred_fallthru
      _
    %410 = vsyncpa [#allocation3], 1
    %411 = vsyncpa [#allocation6], 1
    %412 = vsyncpa [#allocation9], 1
    %413 = vsyncpa [#allocation4], 1

</llo_original>
